<compile_context>
chip_gen: v7x
topology: tpu7x:2x2x1
jax: 0.10.0
libtpu: 0.0.40
codegen_flags: <defaults>
</compile_context>

<pallas_src>
import jax
import jax.numpy as jnp
from jax import lax
from jax.experimental import pallas as pl
from jax.experimental.pallas import tpu as pltpu


def _make_kernel(Nb, H, W, C):
    M = Nb * H
    WC = W * C

    def tap_rows(y, dy, h_idx):
        """Rows shifted so row (n, h) holds y[n, h + dy]; zeros where h + dy is
        outside [0, H).  The pltpu.roll wrap-around rows (image and stack
        boundaries) are exactly the rows the mask zeroes, realizing SAME
        zero-padding in H with no cross-image leakage."""
        if dy == 0:
            return y
        shifted = pltpu.roll(y, (-dy) % M, 0)           # XLU sublane rotate
        valid = jnp.logical_and(h_idx + dy >= 0, h_idx + dy < H)
        return jnp.where(valid, shifted, 0.0)

    def conv3x3_banded(y, wband_ref, b_ref, h_idx):
        """SAME 3x3 conv + BN shift as three accumulated (M,WC)x(WC,WC) matmuls;
        SAME padding in W is encoded in the banded weight matrices."""
        acc = jnp.zeros((M, WC), jnp.float32)
        for ky in range(3):                             # static, unrolled
            tap = tap_rows(y, ky - 1, h_idx).astype(jnp.bfloat16)
            acc = acc + jnp.dot(tap, wband_ref[ky],
                                preferred_element_type=jnp.float32)
        return acc + b_ref[...]

    def kernel(x_ref, w1_ref, w2_ref, w3_ref, b1_ref, b2_ref, b3_ref, o_ref):
        h_idx = lax.broadcasted_iota(jnp.int32, (M, WC), 0) % H   # h within image

        # conv1 (1x1, bias=False) + bn1 + relu: block-diagonal matmul over lanes.
        y = jnp.dot(x_ref[...], w1_ref[...], preferred_element_type=jnp.float32)
        y = jnp.maximum(y + b1_ref[...], 0.0)

        # conv2 (3x3, pad=1, bias=False) + bn2 + relu.
        y = jnp.maximum(conv3x3_banded(y, w2_ref, b2_ref, h_idx), 0.0)

        # conv3 (3x3, stride=1, pad=1, bias=False) + bn3 + residual + relu.
        y = conv3x3_banded(y, w3_ref, b3_ref, h_idx)
        y = jnp.maximum(y + x_ref[...].astype(jnp.float32), 0.0)   # fresh re-read
        o_ref[...] = y.astype(o_ref.dtype)

    return kernel


def _pack_banded_params(module_params, W):
    """Expand per-channel weights into lane-dense (W*C)-space matrices:
      * conv1: block-diagonal (W*C, W*C) -- a 1x1 conv over packed (w, c) lanes.
      * conv2/conv3: per-ky banded (3, W*C, W*C); entry [w'*C+ci, w*C+co] =
        w[ky, kx=w'-w+1, ci, co] for |w'-w| <= 1, so the lane matmul performs the
        kx taps and SAME zero-padding in W.  BN shift tiled over w to (1, W*C)."""
    w1_cc, w2_hwio, w3_hwio, shift = module_params
    eye_w = jnp.eye(W, dtype=jnp.float32)

    w1_bd = jnp.kron(eye_w, w1_cc.astype(jnp.float32)).astype(jnp.bfloat16)

    def band(w_hwio):
        per_ky = []
        for ky in range(3):
            m = 0.0
            for kx in range(3):
                shift_w = jnp.eye(W, W, k=1 - kx, dtype=jnp.float32)  # w' = w + kx - 1
                m = m + jnp.kron(shift_w, w_hwio[ky, kx].astype(jnp.float32))
            per_ky.append(m)
        return jnp.stack(per_ky).astype(jnp.bfloat16)                 # (3, W*C, W*C)

    b = jnp.tile(shift, W).reshape(1, -1).astype(jnp.float32)         # (1, W*C)
    return (w1_bd, band(w2_hwio), band(w3_hwio), b, b, b)


def transbottleneck_forward(x_nhwc, module_params):
    """TransBottleneck forward (stride=1 / upsample=None), NHWC in -> NHWC out (bf16)."""
    N, H, W, C = x_nhwc.shape
    w1_cc = module_params[0]
    if w1_cc.shape != (C, C):
        raise ValueError("residual add requires inplanes == planes "
                         f"(got conv1 weight {w1_cc.shape} for C={C})")
    WC = W * C
    w1_bd, w2_band, w3_band, b1, b2, b3 = _pack_banded_params(module_params, W)

    # Images per grid step: deepen M for the MXU while keeping blocks modest.
    Nb = 1
    for nb in range(1, N + 1):
        if N % nb == 0 and nb * H <= 512:
            Nb = nb
    if Nb != N and (Nb * H) % 8 != 0:
        Nb = N                                       # keep the block sublane-aligned

    # Lane-dense slab: free, contiguous relabel of the NHWC HBM buffer.
    x2d = x_nhwc.astype(jnp.bfloat16).reshape(N * H, WC)

    const = lambda a: pl.BlockSpec(a.shape, lambda n: (0,) * a.ndim)
    grid_spec = pltpu.PrefetchScalarGridSpec(
        num_scalar_prefetch=0,
        grid=(N // Nb,),
        in_specs=[pl.BlockSpec((Nb * H, WC), lambda n: (n, 0)),
                  const(w1_bd), const(w2_band), const(w3_band),
                  const(b1), const(b2), const(b3)],
        out_specs=pl.BlockSpec((Nb * H, WC), lambda n: (n, 0)),
    )
    out2d = pl.pallas_call(
        _make_kernel(Nb, H, W, C),
        out_shape=jax.ShapeDtypeStruct((N * H, WC), jnp.bfloat16),
        grid_spec=grid_spec,
        compiler_params=pltpu.CompilerParams(
            dimension_semantics=("parallel",),       # batch axis across TensorCores
            vmem_limit_bytes=32 * 1024 * 1024),      # working set here is <1 MiB;
                                                     # re-derive per gen for big tiles
    )(x2d, w1_bd, w2_band, w3_band, b1, b2, b3)
    return out2d.reshape(N, H, W, C)


def init_params(key, inplanes, planes, eps=1e-5):
    """xavier_uniform conv weights + default-init inference BatchNorm.  Returns
    BN-scale-folded bf16 weights (w1:(Cin,Cmid); w2,w3:(3,3,Cmid,Cmid) HWIO) and
    the f32 BN shift (Cmid,)."""
    k1, k2, k3 = jax.random.split(key, 3)

    def xavier(k, shape_pt):                    # PyTorch layout (out, in, kh, kw)
        co, ci, kh, kw = shape_pt
        bound = (6.0 / (ci * kh * kw + co * kh * kw)) ** 0.5
        return jax.random.uniform(k, shape_pt, jnp.float32, -bound, bound)

    w1_pt = xavier(k1, (planes, inplanes, 1, 1))
    w2_pt = xavier(k2, (planes, planes, 3, 3))
    w3_pt = xavier(k3, (planes, planes, 3, 3))

    gamma = jnp.ones((planes,), jnp.float32)    # BatchNorm default init,
    beta = jnp.zeros((planes,), jnp.float32)    # inference running statistics
    mean = jnp.zeros((planes,), jnp.float32)
    var = jnp.ones((planes,), jnp.float32)
    scale = gamma / jnp.sqrt(var + eps)
    shift = beta - mean * scale

    w1 = (w1_pt[:, :, 0, 0].T * scale[None, :]).astype(jnp.bfloat16)        # (Cin, Cmid)
    w2 = (jnp.transpose(w2_pt, (2, 3, 1, 0)) * scale).astype(jnp.bfloat16)  # (ky,kx,ci,co)
    w3 = (jnp.transpose(w3_pt, (2, 3, 1, 0)) * scale).astype(jnp.bfloat16)
    return (w1, w2, w3, shift)


def reference_forward(x_nhwc, module_params):
    """Plain-JAX/XLA reference with matching (bf16-operand, f32-accum) numerics."""
    w1_cc, w2_hwio, w3_hwio, shift = module_params
    s = shift.reshape(1, 1, 1, -1)

    def conv3x3(y, w_hwio):
        return lax.conv_general_dilated(
            y.astype(jnp.bfloat16), w_hwio, (1, 1), 'SAME',
            dimension_numbers=('NHWC', 'HWIO', 'NHWC'),
            preferred_element_type=jnp.float32)

    xb = x_nhwc.astype(jnp.bfloat16)
    y = jnp.einsum('nhwc,cd->nhwd', xb, w1_cc, preferred_element_type=jnp.float32)
    y = jax.nn.relu(y + s)
    y = jax.nn.relu(conv3x3(y, w2_hwio) + s)
    y = conv3x3(y, w3_hwio) + s
    return jax.nn.relu(y + xb.astype(jnp.float32))


if __name__ == "__main__":
    key = jax.random.PRNGKey(0)
    kx, kp = jax.random.split(key)

    N, H, W, C = 2, 16, 16, 4            # inplanes == planes == 4, NHWC layout
    x = jax.random.normal(kx, (N, H, W, C), jnp.float32).astype(jnp.bfloat16)
    params = init_params(kp, C, C)

    out = transbottleneck_forward(x, params)
    jax.block_until_ready(out)

    ref = reference_forward(x, params)
    assert out.shape == (N, H, W, C) and out.dtype == jnp.bfloat16
    err = float(jnp.max(jnp.abs(out.astype(jnp.float32) - ref)))
    if err > 5e-2:
        raise AssertionError(
            f"Pallas TransBottleneck mismatch vs reference (max abs err={err})")
    print("KERNEL_OK")
</pallas_src>

<mosaic_0001>
module attributes {stable_mosaic.version = 11 : i64} {
  func.func @kernel(%arg0: i32, %arg1: memref<32x64xbf16, #tpu.memory_space<vmem>>, %arg2: memref<64x64xbf16, #tpu.memory_space<vmem>>, %arg3: memref<3x64x64xbf16, #tpu.memory_space<vmem>>, %arg4: memref<3x64x64xbf16, #tpu.memory_space<vmem>>, %arg5: memref<1x64xf32, #tpu.memory_space<vmem>>, %arg6: memref<1x64xf32, #tpu.memory_space<vmem>>, %arg7: memref<1x64xf32, #tpu.memory_space<vmem>>, %arg8: memref<32x64xbf16, #tpu.memory_space<vmem>>) attributes {dimension_semantics = [#tpu.dimension_semantics<parallel>], iteration_bounds = array<i64: 1>, scalar_prefetch = 0 : i64, scratch_operands = 0 : i64, tpu.core_type = #tpu.core_type<tc>, window_params = [{transform_indices = @transform_0, window_bounds = array<i64: 32, 64>}, {pipeline_mode = #tpu.pipeline_mode<synchronous>, transform_indices = @transform_1, window_bounds = array<i64: 64, 64>}, {pipeline_mode = #tpu.pipeline_mode<synchronous>, transform_indices = @transform_2, window_bounds = array<i64: 3, 64, 64>}, {pipeline_mode = #tpu.pipeline_mode<synchronous>, transform_indices = @transform_3, window_bounds = array<i64: 3, 64, 64>}, {pipeline_mode = #tpu.pipeline_mode<synchronous>, transform_indices = @transform_4, window_bounds = array<i64: 1, 64>}, {pipeline_mode = #tpu.pipeline_mode<synchronous>, transform_indices = @transform_5, window_bounds = array<i64: 1, 64>}, {pipeline_mode = #tpu.pipeline_mode<synchronous>, transform_indices = @transform_6, window_bounds = array<i64: 1, 64>}, {transform_indices = @transform_7, window_bounds = array<i64: 32, 64>}]} {
    %0 = tpu.iota {dimensions = array<i32: 0>} : vector<32x64xi32>
    %c16_i32 = arith.constant 16 : i32
    %c0_i32 = arith.constant 0 : i32
    %1 = arith.cmpi eq, %c16_i32, %c0_i32 : i32
    %c1_i32 = arith.constant 1 : i32
    %2 = arith.select %1, %c1_i32, %c16_i32 : i32
    %3 = vector.broadcast %2 : i32 to vector<32x64xi32>
    %4 = arith.remsi %0, %3 : vector<32x64xi32>
    %c0_i32_0 = arith.constant 0 : i32
    %5 = vector.broadcast %c0_i32_0 : i32 to vector<32x64xi32>
    %6 = arith.cmpi ne, %4, %5 : vector<32x64xi32>
    %c0_i32_1 = arith.constant 0 : i32
    %7 = vector.broadcast %c0_i32_1 : i32 to vector<32x64xi32>
    %8 = arith.cmpi slt, %4, %7 : vector<32x64xi32>
    %c0_i32_2 = arith.constant 0 : i32
    %9 = arith.cmpi slt, %2, %c0_i32_2 : i32
    %10 = vector.broadcast %9 : i1 to vector<32x64xi1>
    %11 = vector.broadcast %10 : vector<32x64xi1> to vector<32x64xi1>
    %12 = arith.xori %8, %11 : vector<32x64xi1>
    %13 = arith.andi %12, %6 : vector<32x64xi1>
    %14 = vector.broadcast %2 : i32 to vector<32x64xi32>
    %15 = arith.addi %4, %14 : vector<32x64xi32>
    %16 = arith.select %13, %15, %4 : vector<32x64xi1>, vector<32x64xi32>
    %c0 = arith.constant 0 : index
    %c0_3 = arith.constant 0 : index
    %17 = vector.load %arg1[%c0, %c0_3] : memref<32x64xbf16, #tpu.memory_space<vmem>>, vector<32x64xbf16>
    %c0_4 = arith.constant 0 : index
    %c0_5 = arith.constant 0 : index
    %18 = vector.load %arg2[%c0_4, %c0_5] : memref<64x64xbf16, #tpu.memory_space<vmem>>, vector<64x64xbf16>
    %cst = arith.constant dense<0.000000e+00> : vector<32x64xf32>
    %19 = tpu.matmul %17, %18, %cst {dimension_numbers = #tpu.dot_dimension_numbers<[1], [0], [0], [1], [0, 0, 1, 1], [], []>} : vector<32x64xbf16>, vector<64x64xbf16>, vector<32x64xf32> -> vector<32x64xf32>
    %c0_6 = arith.constant 0 : index
    %c0_7 = arith.constant 0 : index
    %20 = vector.load %arg5[%c0_6, %c0_7] : memref<1x64xf32, #tpu.memory_space<vmem>>, vector<1x64xf32>
    %21 = vector.broadcast %20 : vector<1x64xf32> to vector<32x64xf32>
    %22 = arith.addf %19, %21 : vector<32x64xf32>
    %cst_8 = arith.constant 0.000000e+00 : f32
    %23 = vector.broadcast %cst_8 : f32 to vector<32x64xf32>
    %24 = arith.maximumf %22, %23 : vector<32x64xf32>
    %cst_9 = arith.constant 0.000000e+00 : f32
    %25 = vector.broadcast %cst_9 : f32 to vector<32x64xf32>
    %c1_i32_10 = arith.constant 1 : i32
    %26 = tpu.dynamic_rotate %24 by %c1_i32_10 dim 0 : vector<32x64xf32>, i32 -> vector<32x64xf32>
    %c-1_i32 = arith.constant -1 : i32
    %27 = vector.broadcast %c-1_i32 : i32 to vector<32x64xi32>
    %28 = arith.addi %16, %27 : vector<32x64xi32>
    %c0_i32_11 = arith.constant 0 : i32
    %29 = vector.broadcast %c0_i32_11 : i32 to vector<32x64xi32>
    %30 = arith.cmpi sge, %28, %29 : vector<32x64xi32>
    %c-1_i32_12 = arith.constant -1 : i32
    %31 = vector.broadcast %c-1_i32_12 : i32 to vector<32x64xi32>
    %32 = arith.addi %16, %31 : vector<32x64xi32>
    %c16_i32_13 = arith.constant 16 : i32
    %33 = vector.broadcast %c16_i32_13 : i32 to vector<32x64xi32>
    %34 = arith.cmpi slt, %32, %33 : vector<32x64xi32>
    %35 = arith.andi %30, %34 : vector<32x64xi1>
    %cst_14 = arith.constant 0.000000e+00 : f32
    %36 = vector.broadcast %cst_14 : f32 to vector<32x64xf32>
    %37 = arith.select %35, %26, %36 : vector<32x64xi1>, vector<32x64xf32>
    %38 = arith.truncf %37 : vector<32x64xf32> to vector<32x64xbf16>
    %c0_15 = arith.constant 0 : index
    %c0_16 = arith.constant 0 : index
    %c0_17 = arith.constant 0 : index
    %39 = vector.load %arg3[%c0_15, %c0_16, %c0_17] : memref<3x64x64xbf16, #tpu.memory_space<vmem>>, vector<1x64x64xbf16>
    %40 = vector.shape_cast %39 : vector<1x64x64xbf16> to vector<64x64xbf16>
    %cst_18 = arith.constant dense<0.000000e+00> : vector<32x64xf32>
    %41 = tpu.matmul %38, %40, %cst_18 {dimension_numbers = #tpu.dot_dimension_numbers<[1], [0], [0], [1], [0, 0, 1, 1], [], []>} : vector<32x64xbf16>, vector<64x64xbf16>, vector<32x64xf32> -> vector<32x64xf32>
    %42 = arith.addf %25, %41 : vector<32x64xf32>
    %43 = arith.truncf %24 : vector<32x64xf32> to vector<32x64xbf16>
    %c1 = arith.constant 1 : index
    %c0_19 = arith.constant 0 : index
    %c0_20 = arith.constant 0 : index
    %44 = vector.load %arg3[%c1, %c0_19, %c0_20] : memref<3x64x64xbf16, #tpu.memory_space<vmem>>, vector<1x64x64xbf16>
    %45 = vector.shape_cast %44 : vector<1x64x64xbf16> to vector<64x64xbf16>
    %cst_21 = arith.constant dense<0.000000e+00> : vector<32x64xf32>
    %46 = tpu.matmul %43, %45, %cst_21 {dimension_numbers = #tpu.dot_dimension_numbers<[1], [0], [0], [1], [0, 0, 1, 1], [], []>} : vector<32x64xbf16>, vector<64x64xbf16>, vector<32x64xf32> -> vector<32x64xf32>
    %47 = arith.addf %42, %46 : vector<32x64xf32>
    %c31_i32 = arith.constant 31 : i32
    %48 = tpu.dynamic_rotate %24 by %c31_i32 dim 0 : vector<32x64xf32>, i32 -> vector<32x64xf32>
    %c1_i32_22 = arith.constant 1 : i32
    %49 = vector.broadcast %c1_i32_22 : i32 to vector<32x64xi32>
    %50 = arith.addi %16, %49 : vector<32x64xi32>
    %c0_i32_23 = arith.constant 0 : i32
    %51 = vector.broadcast %c0_i32_23 : i32 to vector<32x64xi32>
    %52 = arith.cmpi sge, %50, %51 : vector<32x64xi32>
    %c1_i32_24 = arith.constant 1 : i32
    %53 = vector.broadcast %c1_i32_24 : i32 to vector<32x64xi32>
    %54 = arith.addi %16, %53 : vector<32x64xi32>
    %c16_i32_25 = arith.constant 16 : i32
    %55 = vector.broadcast %c16_i32_25 : i32 to vector<32x64xi32>
    %56 = arith.cmpi slt, %54, %55 : vector<32x64xi32>
    %57 = arith.andi %52, %56 : vector<32x64xi1>
    %cst_26 = arith.constant 0.000000e+00 : f32
    %58 = vector.broadcast %cst_26 : f32 to vector<32x64xf32>
    %59 = arith.select %57, %48, %58 : vector<32x64xi1>, vector<32x64xf32>
    %60 = arith.truncf %59 : vector<32x64xf32> to vector<32x64xbf16>
    %c2 = arith.constant 2 : index
    %c0_27 = arith.constant 0 : index
    %c0_28 = arith.constant 0 : index
    %61 = vector.load %arg3[%c2, %c0_27, %c0_28] : memref<3x64x64xbf16, #tpu.memory_space<vmem>>, vector<1x64x64xbf16>
    %62 = vector.shape_cast %61 : vector<1x64x64xbf16> to vector<64x64xbf16>
    %cst_29 = arith.constant dense<0.000000e+00> : vector<32x64xf32>
    %63 = tpu.matmul %60, %62, %cst_29 {dimension_numbers = #tpu.dot_dimension_numbers<[1], [0], [0], [1], [0, 0, 1, 1], [], []>} : vector<32x64xbf16>, vector<64x64xbf16>, vector<32x64xf32> -> vector<32x64xf32>
    %64 = arith.addf %47, %63 : vector<32x64xf32>
    %c0_30 = arith.constant 0 : index
    %c0_31 = arith.constant 0 : index
    %65 = vector.load %arg6[%c0_30, %c0_31] : memref<1x64xf32, #tpu.memory_space<vmem>>, vector<1x64xf32>
    %66 = vector.broadcast %65 : vector<1x64xf32> to vector<32x64xf32>
    %67 = arith.addf %64, %66 : vector<32x64xf32>
    %cst_32 = arith.constant 0.000000e+00 : f32
    %68 = vector.broadcast %cst_32 : f32 to vector<32x64xf32>
    %69 = arith.maximumf %67, %68 : vector<32x64xf32>
    %cst_33 = arith.constant 0.000000e+00 : f32
    %70 = vector.broadcast %cst_33 : f32 to vector<32x64xf32>
    %c1_i32_34 = arith.constant 1 : i32
    %71 = tpu.dynamic_rotate %69 by %c1_i32_34 dim 0 : vector<32x64xf32>, i32 -> vector<32x64xf32>
    %c-1_i32_35 = arith.constant -1 : i32
    %72 = vector.broadcast %c-1_i32_35 : i32 to vector<32x64xi32>
    %73 = arith.addi %16, %72 : vector<32x64xi32>
    %c0_i32_36 = arith.constant 0 : i32
    %74 = vector.broadcast %c0_i32_36 : i32 to vector<32x64xi32>
    %75 = arith.cmpi sge, %73, %74 : vector<32x64xi32>
    %c-1_i32_37 = arith.constant -1 : i32
    %76 = vector.broadcast %c-1_i32_37 : i32 to vector<32x64xi32>
    %77 = arith.addi %16, %76 : vector<32x64xi32>
    %c16_i32_38 = arith.constant 16 : i32
    %78 = vector.broadcast %c16_i32_38 : i32 to vector<32x64xi32>
    %79 = arith.cmpi slt, %77, %78 : vector<32x64xi32>
    %80 = arith.andi %75, %79 : vector<32x64xi1>
    %cst_39 = arith.constant 0.000000e+00 : f32
    %81 = vector.broadcast %cst_39 : f32 to vector<32x64xf32>
    %82 = arith.select %80, %71, %81 : vector<32x64xi1>, vector<32x64xf32>
    %83 = arith.truncf %82 : vector<32x64xf32> to vector<32x64xbf16>
    %c0_40 = arith.constant 0 : index
    %c0_41 = arith.constant 0 : index
    %c0_42 = arith.constant 0 : index
    %84 = vector.load %arg4[%c0_40, %c0_41, %c0_42] : memref<3x64x64xbf16, #tpu.memory_space<vmem>>, vector<1x64x64xbf16>
    %85 = vector.shape_cast %84 : vector<1x64x64xbf16> to vector<64x64xbf16>
    %cst_43 = arith.constant dense<0.000000e+00> : vector<32x64xf32>
    %86 = tpu.matmul %83, %85, %cst_43 {dimension_numbers = #tpu.dot_dimension_numbers<[1], [0], [0], [1], [0, 0, 1, 1], [], []>} : vector<32x64xbf16>, vector<64x64xbf16>, vector<32x64xf32> -> vector<32x64xf32>
    %87 = arith.addf %70, %86 : vector<32x64xf32>
    %88 = arith.truncf %69 : vector<32x64xf32> to vector<32x64xbf16>
    %c1_44 = arith.constant 1 : index
    %c0_45 = arith.constant 0 : index
    %c0_46 = arith.constant 0 : index
    %89 = vector.load %arg4[%c1_44, %c0_45, %c0_46] : memref<3x64x64xbf16, #tpu.memory_space<vmem>>, vector<1x64x64xbf16>
    %90 = vector.shape_cast %89 : vector<1x64x64xbf16> to vector<64x64xbf16>
    %cst_47 = arith.constant dense<0.000000e+00> : vector<32x64xf32>
    %91 = tpu.matmul %88, %90, %cst_47 {dimension_numbers = #tpu.dot_dimension_numbers<[1], [0], [0], [1], [0, 0, 1, 1], [], []>} : vector<32x64xbf16>, vector<64x64xbf16>, vector<32x64xf32> -> vector<32x64xf32>
    %92 = arith.addf %87, %91 : vector<32x64xf32>
    %c31_i32_48 = arith.constant 31 : i32
    %93 = tpu.dynamic_rotate %69 by %c31_i32_48 dim 0 : vector<32x64xf32>, i32 -> vector<32x64xf32>
    %c1_i32_49 = arith.constant 1 : i32
    %94 = vector.broadcast %c1_i32_49 : i32 to vector<32x64xi32>
    %95 = arith.addi %16, %94 : vector<32x64xi32>
    %c0_i32_50 = arith.constant 0 : i32
    %96 = vector.broadcast %c0_i32_50 : i32 to vector<32x64xi32>
    %97 = arith.cmpi sge, %95, %96 : vector<32x64xi32>
    %c1_i32_51 = arith.constant 1 : i32
    %98 = vector.broadcast %c1_i32_51 : i32 to vector<32x64xi32>
    %99 = arith.addi %16, %98 : vector<32x64xi32>
    %c16_i32_52 = arith.constant 16 : i32
    %100 = vector.broadcast %c16_i32_52 : i32 to vector<32x64xi32>
    %101 = arith.cmpi slt, %99, %100 : vector<32x64xi32>
    %102 = arith.andi %97, %101 : vector<32x64xi1>
    %cst_53 = arith.constant 0.000000e+00 : f32
    %103 = vector.broadcast %cst_53 : f32 to vector<32x64xf32>
    %104 = arith.select %102, %93, %103 : vector<32x64xi1>, vector<32x64xf32>
    %105 = arith.truncf %104 : vector<32x64xf32> to vector<32x64xbf16>
    %c2_54 = arith.constant 2 : index
    %c0_55 = arith.constant 0 : index
    %c0_56 = arith.constant 0 : index
    %106 = vector.load %arg4[%c2_54, %c0_55, %c0_56] : memref<3x64x64xbf16, #tpu.memory_space<vmem>>, vector<1x64x64xbf16>
    %107 = vector.shape_cast %106 : vector<1x64x64xbf16> to vector<64x64xbf16>
    %cst_57 = arith.constant dense<0.000000e+00> : vector<32x64xf32>
    %108 = tpu.matmul %105, %107, %cst_57 {dimension_numbers = #tpu.dot_dimension_numbers<[1], [0], [0], [1], [0, 0, 1, 1], [], []>} : vector<32x64xbf16>, vector<64x64xbf16>, vector<32x64xf32> -> vector<32x64xf32>
    %109 = arith.addf %92, %108 : vector<32x64xf32>
    %c0_58 = arith.constant 0 : index
    %c0_59 = arith.constant 0 : index
    %110 = vector.load %arg7[%c0_58, %c0_59] : memref<1x64xf32, #tpu.memory_space<vmem>>, vector<1x64xf32>
    %111 = vector.broadcast %110 : vector<1x64xf32> to vector<32x64xf32>
    %112 = arith.addf %109, %111 : vector<32x64xf32>
    %c0_60 = arith.constant 0 : index
    %c0_61 = arith.constant 0 : index
    %113 = vector.load %arg1[%c0_60, %c0_61] : memref<32x64xbf16, #tpu.memory_space<vmem>>, vector<32x64xbf16>
    %114 = arith.extf %113 : vector<32x64xbf16> to vector<32x64xf32>
    %115 = arith.addf %112, %114 : vector<32x64xf32>
    %cst_62 = arith.constant 0.000000e+00 : f32
    %116 = vector.broadcast %cst_62 : f32 to vector<32x64xf32>
    %117 = arith.maximumf %115, %116 : vector<32x64xf32>
    %118 = arith.truncf %117 : vector<32x64xf32> to vector<32x64xbf16>
    %c0_63 = arith.constant 0 : index
    %c0_64 = arith.constant 0 : index
    %119 = vector.load %arg8[%c0_63, %c0_64] : memref<32x64xbf16, #tpu.memory_space<vmem>>, vector<32x64xbf16>
    tpu.vector_store %arg8[%c0_63, %c0_64], %118 {strides = array<i32>} : memref<32x64xbf16, #tpu.memory_space<vmem>>, vector<32x64xbf16>,
    return
  }
  func.func @transform_0(%arg0: i32) -> (i32, i32) {
    %c0_i32 = arith.constant 0 : i32
    %c0_i32_0 = arith.constant 0 : i32
    return %arg0, %c0_i32 : i32, i32
  }
  func.func @transform_1(%arg0: i32) -> (i32, i32) {
    %c0_i32 = arith.constant 0 : i32
    %c0_i32_0 = arith.constant 0 : i32
    %c0_i32_1 = arith.constant 0 : i32
    return %c0_i32, %c0_i32_0 : i32, i32
  }
  func.func @transform_2(%arg0: i32) -> (i32, i32, i32) {
    %c0_i32 = arith.constant 0 : i32
    %c0_i32_0 = arith.constant 0 : i32
    %c0_i32_1 = arith.constant 0 : i32
    %c0_i32_2 = arith.constant 0 : i32
    return %c0_i32, %c0_i32_0, %c0_i32_1 : i32, i32, i32
  }
  func.func @transform_3(%arg0: i32) -> (i32, i32, i32) {
    %c0_i32 = arith.constant 0 : i32
    %c0_i32_0 = arith.constant 0 : i32
    %c0_i32_1 = arith.constant 0 : i32
    %c0_i32_2 = arith.constant 0 : i32
    return %c0_i32, %c0_i32_0, %c0_i32_1 : i32, i32, i32
  }
  func.func @transform_4(%arg0: i32) -> (i32, i32) {
    %c0_i32 = arith.constant 0 : i32
    %c0_i32_0 = arith.constant 0 : i32
    %c0_i32_1 = arith.constant 0 : i32
    return %c0_i32, %c0_i32_0 : i32, i32
  }
  func.func @transform_5(%arg0: i32) -> (i32, i32) {
    %c0_i32 = arith.constant 0 : i32
    %c0_i32_0 = arith.constant 0 : i32
    %c0_i32_1 = arith.constant 0 : i32
    return %c0_i32, %c0_i32_0 : i32, i32
  }
  func.func @transform_6(%arg0: i32) -> (i32, i32) {
    %c0_i32 = arith.constant 0 : i32
    %c0_i32_0 = arith.constant 0 : i32
    %c0_i32_1 = arith.constant 0 : i32
    return %c0_i32, %c0_i32_0 : i32, i32
  }
  func.func @transform_7(%arg0: i32) -> (i32, i32) {
    %c0_i32 = arith.constant 0 : i32
    %c0_i32_0 = arith.constant 0 : i32
    return %arg0, %c0_i32 : i32, i32
  }
}

</mosaic_0001>

<llo_original>
// kernel: tpu_custom_call.1
$region0: #{tpu_custom_call.1}
  #allocation0 [shape = 'u32[]', space=smem, size = 0x4, offset = 0x4, fixed_abs, tag = 'smem constant byte address 0x4 - core index']
  #allocation1 [shape = 'u32[144,128]{1,0:T(1,128)}', space=vmem, size = 0x12000, scoped, tag = 'internal scratch']
  %s0 = inlined_call_operand.hbm [shape: bf16[32,64], index: 0, kind: input, shape index: {}]
  %s1 = inlined_call_operand.hbm [shape: bf16[64,64], index: 1, kind: input, shape index: {}]
  %s2 = inlined_call_operand.hbm [shape: bf16[3,64,64], index: 2, kind: input, shape index: {}]
  %s3 = inlined_call_operand.hbm [shape: bf16[3,64,64], index: 3, kind: input, shape index: {}]
  %s4 = inlined_call_operand.vmem [shape: f32[1,64], index: 4, kind: input, shape index: {}]
  %s5 = inlined_call_operand.vmem [shape: f32[1,64], index: 5, kind: input, shape index: {}]
  %s6 = inlined_call_operand.vmem [shape: f32[1,64], index: 6, kind: input, shape index: {}]
  %s7 = inlined_call_operand.hbm [shape: bf16[32,64], index: 7, kind: output, shape index: {}]
  %s8 = sld [smem:[#allocation0]]
  $region54: #{tpu_custom_call.1} parent=0
    _
  %s10 = ssub.s32 1, %s8
  %s11 = scalar_select 0, %s10, %s8
  $region1: #{tpu_custom_call.1} parent=0
    #allocation2 [shape = 'u8[8192]{0}', space=vmem, size = 0x2000, scoped, tag = 'input window, operand 0, single buffered']
    #allocation3 [shape = 's32[1]{0}', space=sflag, size = 0x4, scoped, tag = 'scoped memory for tpu_custom_call.1']
    #allocation4 [shape = 's32[1]{0}', space=sflag, size = 0x4, scoped, tag = 'scoped memory for tpu_custom_call.1']
    #allocation5 [shape = 'u8[16384]{0}', space=vmem, size = 0x4000, scoped, tag = 'input window, operand 1, single buffered']
    #allocation6 [shape = 's32[1]{0}', space=sflag, size = 0x4, scoped, tag = 'scoped memory for tpu_custom_call.1']
    #allocation7 [shape = 'u8[49152]{0}', space=vmem, size = 0xc000, scoped, tag = 'input window, operand 2, single buffered']
    #allocation8 [shape = 'u8[49152]{0}', space=vmem, size = 0xc000, scoped, tag = 'input window, operand 3, single buffered']
    #allocation9 [shape = 's32[1]{0}', space=sflag, size = 0x4, scoped, tag = 'scoped memory for tpu_custom_call.1']
    #allocation10 [shape = 'u8[8192]{0}', space=vmem, size = 0x2000, scoped, tag = 'output window, operand 0, single buffered']
    %12 = vsyncpa [#allocation3], 0
    %13 = vsyncpa [#allocation6], 0
    %14 = vsyncpa [#allocation9], 0
    %15 = vsyncpa [#allocation4], 0
    // Predicated region
    $region2: #{tpu_custom_call.1} parent=1 // pred_check
      _
    $region3: #{tpu_custom_call.1} parent=1 // pred_check_branch
      %17 = sbr.rel (0) target = $region5
    $region4: #{tpu_custom_call.1} parent=1 // pred_region
      %s19 = ssub.s32 256, 256
      %20 = vsyncadd [#allocation3], %s19
      %s21 = sshll.u32 [#allocation2], 4
      %s22 = int_to_ptr.vmem [resolvable:$true] %s21
      %27 = dma.hbm_to_vmem [thread:$0]  %s0, 256, %s22, [#allocation3], 64, 64, 4
    $region5: #{tpu_custom_call.1} parent=1 // pred_fallthru
      _
    // Predicated region
    $region6: #{tpu_custom_call.1} parent=1 // pred_check
      _
    $region7: #{tpu_custom_call.1} parent=1 // pred_check_branch
      %29 = sbr.rel (0) target = $region9
    $region8: #{tpu_custom_call.1} parent=1 // pred_region
      %s31 = ssub.s32 512, 512
      %32 = vsyncadd [#allocation6], %s31
      %s33 = sshll.u32 [#allocation5], 4
      %s34 = int_to_ptr.vmem [resolvable:$true] %s33
      %39 = dma.hbm_to_vmem [thread:$0]  %s1, 512, %s34, [#allocation6], 64, 64, 4
    $region9: #{tpu_custom_call.1} parent=1 // pred_fallthru
      _
    // Predicated region
    $region10: #{tpu_custom_call.1} parent=1 // pred_check
      _
    $region11: #{tpu_custom_call.1} parent=1 // pred_check_branch
      %41 = sbr.rel (0) target = $region13
    $region12: #{tpu_custom_call.1} parent=1 // pred_region
      %s43 = ssub.s32 1536, 1536
      %44 = vsyncadd [#allocation6], %s43
      %s45 = sshll.u32 [#allocation7], 4
      %s46 = int_to_ptr.vmem [resolvable:$true] %s45
      %51 = dma.hbm_to_vmem [thread:$0]  %s2, 1536, %s46, [#allocation6], 64, 64, 4
    $region13: #{tpu_custom_call.1} parent=1 // pred_fallthru
      _
    // Predicated region
    $region14: #{tpu_custom_call.1} parent=1 // pred_check
      _
    $region15: #{tpu_custom_call.1} parent=1 // pred_check_branch
      %53 = sbr.rel (0) target = $region17
    $region16: #{tpu_custom_call.1} parent=1 // pred_region
      %s55 = ssub.s32 1536, 1536
      %56 = vsyncadd [#allocation9], %s55
      %s57 = sshll.u32 [#allocation8], 4
      %s58 = int_to_ptr.vmem [resolvable:$true] %s57
      %63 = dma.hbm_to_vmem [thread:$0]  %s3, 1536, %s58, [#allocation9], 64, 64, 4
    $region17: #{tpu_custom_call.1} parent=1 // pred_fallthru
      _
    // Predicated region
    $region18: #{tpu_custom_call.1} parent=1 // pred_check
      _
    $region19: #{tpu_custom_call.1} parent=1 // pred_check_branch
      %65 = sbr.rel (0) target = $region21
    $region20: #{tpu_custom_call.1} parent=1 // pred_region
      _
    $region21: #{tpu_custom_call.1} parent=1 // pred_fallthru
      _
    // Predicated region
    $region22: #{tpu_custom_call.1} parent=1 // pred_check
      _
    $region23: #{tpu_custom_call.1} parent=1 // pred_check_branch
      %67 = sbr.rel (0) target = $region25
    $region24: #{tpu_custom_call.1} parent=1 // pred_region
      _
    $region25: #{tpu_custom_call.1} parent=1 // pred_fallthru
      _
    // Predicated region
    $region26: #{tpu_custom_call.1} parent=1 // pred_check
      _
    $region27: #{tpu_custom_call.1} parent=1 // pred_check_branch
      %69 = sbr.rel (0) target = $region29
    $region28: #{tpu_custom_call.1} parent=1 // pred_region
      _
    $region29: #{tpu_custom_call.1} parent=1 // pred_fallthru
      _
    // Predicated region
    $region30: #{tpu_custom_call.1} parent=1 // pred_check
      _
    $region31: #{tpu_custom_call.1} parent=1 // pred_check_branch
      %71 = sbr.rel (0) target = $region33
    $region32: #{tpu_custom_call.1} parent=1 // pred_region
      %72 = dma.done [#allocation3], 256
    $region33: #{tpu_custom_call.1} parent=1 // pred_fallthru
      _
    // Predicated region
    $region34: #{tpu_custom_call.1} parent=1 // pred_check
      _
    $region35: #{tpu_custom_call.1} parent=1 // pred_check_branch
      %74 = sbr.rel (0) target = $region37
    $region36: #{tpu_custom_call.1} parent=1 // pred_region
      %75 = dma.done [#allocation6], 512
    $region37: #{tpu_custom_call.1} parent=1 // pred_fallthru
      _
    // Predicated region
    $region38: #{tpu_custom_call.1} parent=1 // pred_check
      _
    $region39: #{tpu_custom_call.1} parent=1 // pred_check_branch
      %77 = sbr.rel (0) target = $region41
    $region40: #{tpu_custom_call.1} parent=1 // pred_region
      %78 = dma.done [#allocation6], 1536
    $region41: #{tpu_custom_call.1} parent=1 // pred_fallthru
      _
    // Predicated region
    $region42: #{tpu_custom_call.1} parent=1 // pred_check
      _
    $region43: #{tpu_custom_call.1} parent=1 // pred_check_branch
      %80 = sbr.rel (0) target = $region45
    $region44: #{tpu_custom_call.1} parent=1 // pred_region
      %81 = dma.done [#allocation9], 1536
    $region45: #{tpu_custom_call.1} parent=1 // pred_fallthru
      _
    %v83 = vlaneseq
    %v84 = vshrl.u32 %v83, 7
    %v85 = vadd.s32 %v84, 8
    %v86 = vadd.s32 %v84, 16
    %v87 = vadd.s32 %v84, 24
    %vm88 = vcmp.lt.s32.totalorder %v84, 0
    %v89 = vsub.s32 0, %v84
    %v90 = vsel %vm88, %v89, %v84
    %v91 = vshrl.u32 %v90, 4
    %v92 = vand.u32 %v90, 15
    %v93 = vsub.s32 0, %v92
    %v94 = vsel %vm88, %v93, %v92
    %vm95 = vcmp.lt.s32.totalorder %v85, 0
    %v96 = vsub.s32 0, %v85
    %v97 = vsel %vm95, %v96, %v85
    %v98 = vshrl.u32 %v97, 4
    %v99 = vand.u32 %v97, 15
    %v100 = vsub.s32 0, %v99
    %v101 = vsel %vm95, %v100, %v99
    %vm102 = vcmp.lt.s32.totalorder %v86, 0
    %v103 = vsub.s32 0, %v86
    %v104 = vsel %vm102, %v103, %v86
    %v105 = vshrl.u32 %v104, 4
    %v106 = vand.u32 %v104, 15
    %v107 = vsub.s32 0, %v106
    %v108 = vsel %vm102, %v107, %v106
    %vm109 = vcmp.lt.s32.totalorder %v87, 0
    %v110 = vsub.s32 0, %v87
    %v111 = vsel %vm109, %v110, %v87
    %v112 = vshrl.u32 %v111, 4
    %v113 = vand.u32 %v111, 15
    %v114 = vsub.s32 0, %v113
    %v115 = vsel %vm109, %v114, %v113
    %vm116 = vcmp.ne.s32.totalorder %v94, 0
    %vm117 = vcmp.ne.s32.totalorder %v101, 0
    %vm118 = vcmp.ne.s32.totalorder %v108, 0
    %vm119 = vcmp.ne.s32.totalorder %v115, 0
    %vm120 = vcmp.lt.s32.totalorder %v94, 0
    %vm121 = vcmp.lt.s32.totalorder %v101, 0
    %vm122 = vcmp.lt.s32.totalorder %v108, 0
    %vm123 = vcmp.lt.s32.totalorder %v115, 0
    %vm124 = vmand %vm120, %vm116
    %vm125 = vmand %vm121, %vm117
    %vm126 = vmand %vm122, %vm118
    %vm127 = vmand %vm123, %vm119
    %v128 = vadd.s32 %v94, 16
    %v129 = vadd.s32 %v101, 16
    %v130 = vadd.s32 %v108, 16
    %v131 = vadd.s32 %v115, 16
    %v132 = vsel %vm124, %v128, %v94
    %v133 = vsel %vm125, %v129, %v101
    %v134 = vsel %vm126, %v130, %v108
    %v135 = vsel %vm127, %v131, %v115
    %v136 = vld [vmem:[#allocation2] sm:$0xf]
    %v137 = vld [vmem:[#allocation2 + $0x4] sm:$0xf]
    %v138 = vld [vmem:[#allocation2 + $0x8] sm:$0xf]
    %v139 = vld [vmem:[#allocation2 + $0xc] sm:$0xf]
    %v140 = vld [vmem:[#allocation5] sm:$0xf]
    %v141 = vld [vmem:[#allocation5 + $0x4] sm:$0xf]
    %v142 = vld [vmem:[#allocation5 + $0x8] sm:$0xf]
    %v143 = vld [vmem:[#allocation5 + $0xc] sm:$0xf]
    %v144 = vld [vmem:[#allocation5 + $0x10] sm:$0xf]
    %v145 = vld [vmem:[#allocation5 + $0x14] sm:$0xf]
    %v146 = vld [vmem:[#allocation5 + $0x18] sm:$0xf]
    %v147 = vld [vmem:[#allocation5 + $0x1c] sm:$0xf]
    %v148 = vld [vmem:[%s4] sm:$0x1]
    %v150 = vlaneseq
    %v151 = vshrl.u32 %v150, 7
    %v152 = vsub.s32 0, %v151
    %v153 = vrot.slane %v148, %v152
    %v159 = vunpack.c.l.b16 %v136
    %v160 = vunpack.c.l.b16 %v137
    %v161 = vunpack.c.l.b16 %v138
    %v162 = vunpack.c.l.b16 %v139
    %v163 = vpack.c.b16 %v160, %v159
    %v164 = vpack.c.b16 %v162, %v161
    %v173 = vunpack.c.l.b16 %v140
    %v174 = vunpack.c.l.b16 %v141
    %v175 = vunpack.c.l.b16 %v142
    %v176 = vunpack.c.l.b16 %v143
    %v177 = vunpack.c.l.b16 %v144
    %v178 = vunpack.c.l.b16 %v145
    %v179 = vunpack.c.l.b16 %v146
    %v180 = vunpack.c.l.b16 %v147
    %v181 = vpack.c.b16 %v174, %v173
    %v182 = vpack.c.b16 %v176, %v175
    %v183 = vpack.c.b16 %v178, %v177
    %v184 = vpack.c.b16 %v180, %v179
    %vm189 = vcmask 523264
    %v191 = vsel %vm189, %v163, 0
    %v194 = vsel %vm189, %v164, 0
    %196 = vmatprep.subr.bf16.mxu0 0
    %197 = vmatpush1.bf16.msra.mxu0 %v181
    %198 = vmatprep.subr.bf16.mxu0 0
    %199 = vmatpush1.bf16.msra.mxu0 %v182
    %200 = vmatprep.subr.bf16.mxu0 0
    %201 = vmatpush1.bf16.msra.mxu0 %v183
    %202 = vmatprep.subr.bf16.mxu0 0
    %203 = vmatpush1.bf16.msra.mxu0 %v184
    %204 = vmatprep.subr.bf16.mxu0 0
    %205 = vmatpush1.bf16.msra.mxu0 0
    %206 = vmatprep.subr.bf16.mxu0 0
    %207 = vmatpush1.bf16.msra.mxu0 0
    %208 = vmatprep.subr.bf16.mxu0 0
    %209 = vmatpush1.bf16.msra.mxu0 0
    %210 = vmatprep.subr.bf16.mxu0 0
    %211 = vmatpush1.bf16.msra.mxu0 0
    %212 = vmatprep.subr.bf16.mxu0 0
    %213 = vmatpush1.bf16.msra.mxu0 0
    %214 = vmatprep.subr.bf16.mxu0 0
    %215 = vmatpush1.bf16.msra.mxu0 0
    %216 = vmatprep.subr.bf16.mxu0 0
    %217 = vmatpush1.bf16.msra.mxu0 0
    %218 = vmatprep.subr.bf16.mxu0 0
    %219 = vmatpush1.bf16.msra.mxu0 0
    %220 = vmatprep.subr.bf16.mxu0 0
    %221 = vmatpush1.bf16.msra.mxu0 0
    %222 = vmatprep.subr.bf16.mxu0 0
    %223 = vmatpush1.bf16.msra.mxu0 0
    %224 = vmatprep.subr.bf16.mxu0 0
    %225 = vmatpush1.bf16.msra.mxu0 0
    %226 = vmatprep.subr.bf16.mxu0 0
    %227 = vmatpush1.bf16.msra.mxu0 0
    %228 = vmatprep.mubr.bf16.mxu0 0
    %229 = vmatmul.mubr.bf16.gmra.mrb[0].mxu0 %v191
    %v230 = vpop.f32.mrb[0].mxu0
    %v231 = vadd.f32 %v153, %v230
    %v232 = vpop.f32.mrb[0].mxu0
    %v233 = vpop.f32.mrb[0].mxu0
    %v234 = vadd.f32 %v153, %v233
    %v235 = vpop.f32.mrb[0].mxu0
    %236 = vmatprep.mubr.bf16.mxu0 0
    %237 = vmatmul.mubr.bf16.gmra.mrb[0].mxu0 %v194
    %v238 = vpop.f32.mrb[0].mxu0
    %v239 = vadd.f32 %v153, %v238
    %v240 = vpop.f32.mrb[0].mxu0
    %v241 = vpop.f32.mrb[0].mxu0
    %v242 = vadd.f32 %v153, %v241
    %v243 = vpop.f32.mrb[0].mxu0
    %244 = vdwg.mxu0
    %v245 = vmax.f32 %v231, 0.0
    %v246 = vmax.f32 %v234, 0.0
    %v247 = vmax.f32 %v239, 0.0
    %v248 = vmax.f32 %v242, 0.0
    %v249 = vrot.slane %v245, 7
    %v250 = vrot.slane %v246, 7
    %v251 = vrot.slane %v247, 7
    %v252 = vrot.slane %v248, 7
    %vm253 = vcmp.lt.s32.totalorder %v84, 1
    %v254 = vsel %vm253, %v251, %v252
    %v255 = vsel %vm253, %v250, %v251
    %v256 = vsel %vm253, %v249, %v250
    %v257 = vsel %vm253, %v252, %v249
    %v258 = vadd.s32 %v132, 4294967295
    %v259 = vadd.s32 %v133, 4294967295
    %v260 = vadd.s32 %v134, 4294967295
    %v261 = vadd.s32 %v135, 4294967295
    %vm262 = vcmp.ge.s32.totalorder %v258, 0
    %vm263 = vcmp.ge.s32.totalorder %v259, 0
    %vm264 = vcmp.ge.s32.totalorder %v260, 0
    %vm265 = vcmp.ge.s32.totalorder %v261, 0
    %vm266 = vcmp.lt.s32.totalorder %v258, 16
    %vm267 = vcmp.lt.s32.totalorder %v259, 16
    %vm268 = vcmp.lt.s32.totalorder %v260, 16
    %vm269 = vcmp.lt.s32.totalorder %v261, 16
    %vm270 = vmand %vm262, %vm266
    %vm271 = vmand %vm263, %vm267
    %vm272 = vmand %vm264, %vm268
    %vm273 = vmand %vm265, %vm269
    %v274 = vsel %vm270, %v257, 0.0
    %v275 = vsel %vm271, %v256, 0.0
    %v276 = vsel %vm272, %v255, 0.0
    %v277 = vsel %vm273, %v254, 0.0
    %v278 = vpack.c.bf16 %v275, %v274
    %v279 = vpack.c.bf16 %v277, %v276
    %v280 = vld [vmem:[#allocation7] sm:$0xf]
    %v281 = vld [vmem:[#allocation7 + $0x4] sm:$0xf]
    %v282 = vld [vmem:[#allocation7 + $0x8] sm:$0xf]
    %v283 = vld [vmem:[#allocation7 + $0xc] sm:$0xf]
    %v284 = vld [vmem:[#allocation7 + $0x10] sm:$0xf]
    %v285 = vld [vmem:[#allocation7 + $0x14] sm:$0xf]
    %v286 = vld [vmem:[#allocation7 + $0x18] sm:$0xf]
    %v287 = vld [vmem:[#allocation7 + $0x1c] sm:$0xf]
    %v288 = vpack.c.bf16 %v246, %v245
    %v289 = vpack.c.bf16 %v248, %v247
    %s290 = scalar_lea.vmem [#allocation7], 32
    %v291 = vld [vmem:[%s290] sm:$0xf]
    %v292 = vld [vmem:[%s290 + $0x4] sm:$0xf]
    %v293 = vld [vmem:[%s290 + $0x8] sm:$0xf]
    %v294 = vld [vmem:[%s290 + $0xc] sm:$0xf]
    %v295 = vld [vmem:[%s290 + $0x10] sm:$0xf]
    %v296 = vld [vmem:[%s290 + $0x14] sm:$0xf]
    %v297 = vld [vmem:[%s290 + $0x18] sm:$0xf]
    %v298 = vld [vmem:[%s290 + $0x1c] sm:$0xf]
    %v307 = vunpack.c.l.b16 %v291
    %v308 = vunpack.c.l.b16 %v292
    %v309 = vunpack.c.l.b16 %v293
    %v310 = vunpack.c.l.b16 %v294
    %v311 = vunpack.c.l.b16 %v295
    %v312 = vunpack.c.l.b16 %v296
    %v313 = vunpack.c.l.b16 %v297
    %v314 = vunpack.c.l.b16 %v298
    %v315 = vpack.c.b16 %v308, %v307
    %v316 = vpack.c.b16 %v310, %v309
    %v317 = vpack.c.b16 %v312, %v311
    %v318 = vpack.c.b16 %v314, %v313
    %v324 = vsel %vm189, %v288, 0
    %v327 = vsel %vm189, %v289, 0
    %329 = vmatprep.subr.bf16.mxu0 0
    %330 = vmatpush1.bf16.msra.mxu0 %v315
    %331 = vmatprep.subr.bf16.mxu0 0
    %332 = vmatpush1.bf16.msra.mxu0 %v316
    %333 = vmatprep.subr.bf16.mxu0 0
    %334 = vmatpush1.bf16.msra.mxu0 %v317
    %335 = vmatprep.subr.bf16.mxu0 0
    %336 = vmatpush1.bf16.msra.mxu0 %v318
    %337 = vmatprep.subr.bf16.mxu0 0
    %338 = vmatpush1.bf16.msra.mxu0 0
    %339 = vmatprep.subr.bf16.mxu0 0
    %340 = vmatpush1.bf16.msra.mxu0 0
    %341 = vmatprep.subr.bf16.mxu0 0
    %342 = vmatpush1.bf16.msra.mxu0 0
    %343 = vmatprep.subr.bf16.mxu0 0
    %344 = vmatpush1.bf16.msra.mxu0 0
    %345 = vmatprep.subr.bf16.mxu0 0
    %346 = vmatpush1.bf16.msra.mxu0 0
    %347 = vmatprep.subr.bf16.mxu0 0
    %348 = vmatpush1.bf16.msra.mxu0 0
    %349 = vmatprep.subr.bf16.mxu0 0
    %350 = vmatpush1.bf16.msra.mxu0 0
    %351 = vmatprep.subr.bf16.mxu0 0
    %352 = vmatpush1.bf16.msra.mxu0 0
    %353 = vmatprep.subr.bf16.mxu0 0
    %354 = vmatpush1.bf16.msra.mxu0 0
    %355 = vmatprep.subr.bf16.mxu0 0
    %356 = vmatpush1.bf16.msra.mxu0 0
    %357 = vmatprep.subr.bf16.mxu0 0
    %358 = vmatpush1.bf16.msra.mxu0 0
    %359 = vmatprep.subr.bf16.mxu0 0
    %360 = vmatpush1.bf16.msra.mxu0 0
    %361 = vmatprep.mubr.bf16.mxu0 0
    %362 = vmatmul.mubr.bf16.gmra.mrb[0].mxu0 %v324
    %v363 = vpop.f32.mrb[0].mxu0
    %v364 = vadd.f32 0.0, %v363
    %v365 = vpop.f32.mrb[0].mxu0
    %v366 = vpop.f32.mrb[0].mxu0
    %v367 = vadd.f32 0.0, %v366
    %v368 = vpop.f32.mrb[0].mxu0
    %369 = vmatprep.mubr.bf16.mxu0 0
    %370 = vmatmul.mubr.bf16.gmra.mrb[0].mxu0 %v327
    %v371 = vpop.f32.mrb[0].mxu0
    %v372 = vadd.f32 0.0, %v371
    %v373 = vpop.f32.mrb[0].mxu0
    %v374 = vpop.f32.mrb[0].mxu0
    %v375 = vadd.f32 0.0, %v374
    %v376 = vpop.f32.mrb[0].mxu0
    %377 = vdwg.mxu0
    %v386 = vunpack.c.l.b16 %v280
    %v387 = vunpack.c.l.b16 %v281
    %v388 = vunpack.c.l.b16 %v282
    %v389 = vunpack.c.l.b16 %v283
    %v390 = vunpack.c.l.b16 %v284
    %v391 = vunpack.c.l.b16 %v285
    %v392 = vunpack.c.l.b16 %v286
    %v393 = vunpack.c.l.b16 %v287
    %v394 = vpack.c.b16 %v387, %v386
    %v395 = vpack.c.b16 %v389, %v388
    %v396 = vpack.c.b16 %v391, %v390
    %v397 = vpack.c.b16 %v393, %v392
    %v403 = vsel %vm189, %v278, 0
    %v406 = vsel %vm189, %v279, 0
    %408 = vmatprep.subr.bf16.mxu0 0
    %409 = vmatpush1.bf16.msra.mxu0 %v394
    %410 = vmatprep.subr.bf16.mxu0 0
    %411 = vmatpush1.bf16.msra.mxu0 %v395
    %412 = vmatprep.subr.bf16.mxu0 0
    %413 = vmatpush1.bf16.msra.mxu0 %v396
    %414 = vmatprep.subr.bf16.mxu0 0
    %415 = vmatpush1.bf16.msra.mxu0 %v397
    %416 = vmatprep.subr.bf16.mxu0 0
    %417 = vmatpush1.bf16.msra.mxu0 0
    %418 = vmatprep.subr.bf16.mxu0 0
    %419 = vmatpush1.bf16.msra.mxu0 0
    %420 = vmatprep.subr.bf16.mxu0 0
    %421 = vmatpush1.bf16.msra.mxu0 0
    %422 = vmatprep.subr.bf16.mxu0 0
    %423 = vmatpush1.bf16.msra.mxu0 0
    %424 = vmatprep.subr.bf16.mxu0 0
    %425 = vmatpush1.bf16.msra.mxu0 0
    %426 = vmatprep.subr.bf16.mxu0 0
    %427 = vmatpush1.bf16.msra.mxu0 0
    %428 = vmatprep.subr.bf16.mxu0 0
    %429 = vmatpush1.bf16.msra.mxu0 0
    %430 = vmatprep.subr.bf16.mxu0 0
    %431 = vmatpush1.bf16.msra.mxu0 0
    %432 = vmatprep.subr.bf16.mxu0 0
    %433 = vmatpush1.bf16.msra.mxu0 0
    %434 = vmatprep.subr.bf16.mxu0 0
    %435 = vmatpush1.bf16.msra.mxu0 0
    %436 = vmatprep.subr.bf16.mxu0 0
    %437 = vmatpush1.bf16.msra.mxu0 0
    %438 = vmatprep.subr.bf16.mxu0 0
    %439 = vmatpush1.bf16.msra.mxu0 0
    %440 = vmatprep.mubr.bf16.mxu0 0
    %441 = vmatmul.mubr.bf16.gmra.mrb[0].mxu0 %v403
    %v442 = vpop.f32.mrb[0].mxu0
    %v443 = vadd.f32 %v364, %v442
    %v444 = vpop.f32.mrb[0].mxu0
    %v445 = vpop.f32.mrb[0].mxu0
    %v446 = vadd.f32 %v367, %v445
    %v447 = vpop.f32.mrb[0].mxu0
    %448 = vmatprep.mubr.bf16.mxu0 0
    %449 = vmatmul.mubr.bf16.gmra.mrb[0].mxu0 %v406
    %v450 = vpop.f32.mrb[0].mxu0
    %v451 = vadd.f32 %v372, %v450
    %v452 = vpop.f32.mrb[0].mxu0
    %v453 = vpop.f32.mrb[0].mxu0
    %v454 = vadd.f32 %v375, %v453
    %v455 = vpop.f32.mrb[0].mxu0
    %456 = vdwg.mxu0
    %v457 = vrot.slane %v245, 1
    %v458 = vrot.slane %v246, 1
    %v459 = vrot.slane %v247, 1
    %v460 = vrot.slane %v248, 1
    %vm461 = vcmp.lt.s32.totalorder %v84, 7
    %v462 = vsel %vm461, %v459, %v460
    %v463 = vsel %vm461, %v458, %v459
    %v464 = vsel %vm461, %v457, %v458
    %v465 = vsel %vm461, %v460, %v457
    %v466 = vadd.s32 %v132, 1
    %v467 = vadd.s32 %v133, 1
    %v468 = vadd.s32 %v134, 1
    %v469 = vadd.s32 %v135, 1
    %vm470 = vcmp.ge.s32.totalorder %v466, 0
    %vm471 = vcmp.ge.s32.totalorder %v467, 0
    %vm472 = vcmp.ge.s32.totalorder %v468, 0
    %vm473 = vcmp.ge.s32.totalorder %v469, 0
    %vm474 = vcmp.lt.s32.totalorder %v466, 16
    %vm475 = vcmp.lt.s32.totalorder %v467, 16
    %vm476 = vcmp.lt.s32.totalorder %v468, 16
    %vm477 = vcmp.lt.s32.totalorder %v469, 16
    %vm478 = vmand %vm470, %vm474
    %vm479 = vmand %vm471, %vm475
    %vm480 = vmand %vm472, %vm476
    %vm481 = vmand %vm473, %vm477
    %v482 = vsel %vm478, %v464, 0.0
    %v483 = vsel %vm479, %v463, 0.0
    %v484 = vsel %vm480, %v462, 0.0
    %v485 = vsel %vm481, %v465, 0.0
    %v486 = vpack.c.bf16 %v483, %v482
    %v487 = vpack.c.bf16 %v485, %v484
    %s488 = scalar_lea.vmem [#allocation7], 64
    %v489 = vld [vmem:[%s488] sm:$0xf]
    %v490 = vld [vmem:[%s488 + $0x4] sm:$0xf]
    %v491 = vld [vmem:[%s488 + $0x8] sm:$0xf]
    %v492 = vld [vmem:[%s488 + $0xc] sm:$0xf]
    %v493 = vld [vmem:[%s488 + $0x10] sm:$0xf]
    %v494 = vld [vmem:[%s488 + $0x14] sm:$0xf]
    %v495 = vld [vmem:[%s488 + $0x18] sm:$0xf]
    %v496 = vld [vmem:[%s488 + $0x1c] sm:$0xf]
    %v505 = vunpack.c.l.b16 %v489
    %v506 = vunpack.c.l.b16 %v490
    %v507 = vunpack.c.l.b16 %v491
    %v508 = vunpack.c.l.b16 %v492
    %v509 = vunpack.c.l.b16 %v493
    %v510 = vunpack.c.l.b16 %v494
    %v511 = vunpack.c.l.b16 %v495
    %v512 = vunpack.c.l.b16 %v496
    %v513 = vpack.c.b16 %v506, %v505
    %v514 = vpack.c.b16 %v508, %v507
    %v515 = vpack.c.b16 %v510, %v509
    %v516 = vpack.c.b16 %v512, %v511
    %v522 = vsel %vm189, %v486, 0
    %v525 = vsel %vm189, %v487, 0
    %527 = vmatprep.subr.bf16.mxu0 0
    %528 = vmatpush1.bf16.msra.mxu0 %v513
    %529 = vmatprep.subr.bf16.mxu0 0
    %530 = vmatpush1.bf16.msra.mxu0 %v514
    %531 = vmatprep.subr.bf16.mxu0 0
    %532 = vmatpush1.bf16.msra.mxu0 %v515
    %533 = vmatprep.subr.bf16.mxu0 0
    %534 = vmatpush1.bf16.msra.mxu0 %v516
    %535 = vmatprep.subr.bf16.mxu0 0
    %536 = vmatpush1.bf16.msra.mxu0 0
    %537 = vmatprep.subr.bf16.mxu0 0
    %538 = vmatpush1.bf16.msra.mxu0 0
    %539 = vmatprep.subr.bf16.mxu0 0
    %540 = vmatpush1.bf16.msra.mxu0 0
    %541 = vmatprep.subr.bf16.mxu0 0
    %542 = vmatpush1.bf16.msra.mxu0 0
    %543 = vmatprep.subr.bf16.mxu0 0
    %544 = vmatpush1.bf16.msra.mxu0 0
    %545 = vmatprep.subr.bf16.mxu0 0
    %546 = vmatpush1.bf16.msra.mxu0 0
    %547 = vmatprep.subr.bf16.mxu0 0
    %548 = vmatpush1.bf16.msra.mxu0 0
    %549 = vmatprep.subr.bf16.mxu0 0
    %550 = vmatpush1.bf16.msra.mxu0 0
    %551 = vmatprep.subr.bf16.mxu0 0
    %552 = vmatpush1.bf16.msra.mxu0 0
    %553 = vmatprep.subr.bf16.mxu0 0
    %554 = vmatpush1.bf16.msra.mxu0 0
    %555 = vmatprep.subr.bf16.mxu0 0
    %556 = vmatpush1.bf16.msra.mxu0 0
    %557 = vmatprep.subr.bf16.mxu0 0
    %558 = vmatpush1.bf16.msra.mxu0 0
    %559 = vmatprep.mubr.bf16.mxu0 0
    %560 = vmatmul.mubr.bf16.gmra.mrb[0].mxu0 %v522
    %v561 = vpop.f32.mrb[0].mxu0
    %v562 = vadd.f32 0.0, %v561
    %v563 = vpop.f32.mrb[0].mxu0
    %v564 = vpop.f32.mrb[0].mxu0
    %v565 = vadd.f32 0.0, %v564
    %v566 = vpop.f32.mrb[0].mxu0
    %567 = vmatprep.mubr.bf16.mxu0 0
    %568 = vmatmul.mubr.bf16.gmra.mrb[0].mxu0 %v525
    %v569 = vpop.f32.mrb[0].mxu0
    %v570 = vadd.f32 0.0, %v569
    %v571 = vpop.f32.mrb[0].mxu0
    %v572 = vpop.f32.mrb[0].mxu0
    %v573 = vadd.f32 0.0, %v572
    %v574 = vpop.f32.mrb[0].mxu0
    %575 = vdwg.mxu0
    %v576 = vadd.f32 %v443, %v562
    %v577 = vadd.f32 %v446, %v565
    %v578 = vadd.f32 %v451, %v570
    %v579 = vadd.f32 %v454, %v573
    %v580 = vld [vmem:[%s5] sm:$0x1]
    %v582 = vlaneseq
    %v583 = vshrl.u32 %v582, 7
    %v584 = vsub.s32 0, %v583
    %v585 = vrot.slane %v580, %v584
    %v587 = vadd.f32 %v576, %v585
    %v588 = vadd.f32 %v577, %v585
    %v589 = vadd.f32 %v578, %v585
    %v590 = vadd.f32 %v579, %v585
    %v591 = vmax.f32 %v587, 0.0
    %v592 = vmax.f32 %v588, 0.0
    %v593 = vmax.f32 %v589, 0.0
    %v594 = vmax.f32 %v590, 0.0
    %v595 = vrot.slane %v591, 7
    %v596 = vrot.slane %v592, 7
    %v597 = vrot.slane %v593, 7
    %v598 = vrot.slane %v594, 7
    %v599 = vsel %vm253, %v597, %v598
    %v600 = vsel %vm253, %v596, %v597
    %v601 = vsel %vm253, %v595, %v596
    %v602 = vsel %vm253, %v598, %v595
    %v603 = vsel %vm270, %v602, 0.0
    %v604 = vsel %vm271, %v601, 0.0
    %v605 = vsel %vm272, %v600, 0.0
    %v606 = vsel %vm273, %v599, 0.0
    %v607 = vpack.c.bf16 %v604, %v603
    %v608 = vpack.c.bf16 %v606, %v605
    %v609 = vld [vmem:[#allocation8] sm:$0xf]
    %v610 = vld [vmem:[#allocation8 + $0x4] sm:$0xf]
    %v611 = vld [vmem:[#allocation8 + $0x8] sm:$0xf]
    %v612 = vld [vmem:[#allocation8 + $0xc] sm:$0xf]
    %v613 = vld [vmem:[#allocation8 + $0x10] sm:$0xf]
    %v614 = vld [vmem:[#allocation8 + $0x14] sm:$0xf]
    %v615 = vld [vmem:[#allocation8 + $0x18] sm:$0xf]
    %v616 = vld [vmem:[#allocation8 + $0x1c] sm:$0xf]
    %v617 = vpack.c.bf16 %v592, %v591
    %v618 = vpack.c.bf16 %v594, %v593
    %s619 = scalar_lea.vmem [#allocation8], 32
    %v620 = vld [vmem:[%s619] sm:$0xf]
    %v621 = vld [vmem:[%s619 + $0x4] sm:$0xf]
    %v622 = vld [vmem:[%s619 + $0x8] sm:$0xf]
    %v623 = vld [vmem:[%s619 + $0xc] sm:$0xf]
    %v624 = vld [vmem:[%s619 + $0x10] sm:$0xf]
    %v625 = vld [vmem:[%s619 + $0x14] sm:$0xf]
    %v626 = vld [vmem:[%s619 + $0x18] sm:$0xf]
    %v627 = vld [vmem:[%s619 + $0x1c] sm:$0xf]
    %v636 = vunpack.c.l.b16 %v620
    %v637 = vunpack.c.l.b16 %v621
    %v638 = vunpack.c.l.b16 %v622
    %v639 = vunpack.c.l.b16 %v623
    %v640 = vunpack.c.l.b16 %v624
    %v641 = vunpack.c.l.b16 %v625
    %v642 = vunpack.c.l.b16 %v626
    %v643 = vunpack.c.l.b16 %v627
    %v644 = vpack.c.b16 %v637, %v636
    %v645 = vpack.c.b16 %v639, %v638
    %v646 = vpack.c.b16 %v641, %v640
    %v647 = vpack.c.b16 %v643, %v642
    %v653 = vsel %vm189, %v617, 0
    %v656 = vsel %vm189, %v618, 0
    %658 = vmatprep.subr.bf16.mxu0 0
    %659 = vmatpush1.bf16.msra.mxu0 %v644
    %660 = vmatprep.subr.bf16.mxu0 0
    %661 = vmatpush1.bf16.msra.mxu0 %v645
    %662 = vmatprep.subr.bf16.mxu0 0
    %663 = vmatpush1.bf16.msra.mxu0 %v646
    %664 = vmatprep.subr.bf16.mxu0 0
    %665 = vmatpush1.bf16.msra.mxu0 %v647
    %666 = vmatprep.subr.bf16.mxu0 0
    %667 = vmatpush1.bf16.msra.mxu0 0
    %668 = vmatprep.subr.bf16.mxu0 0
    %669 = vmatpush1.bf16.msra.mxu0 0
    %670 = vmatprep.subr.bf16.mxu0 0
    %671 = vmatpush1.bf16.msra.mxu0 0
    %672 = vmatprep.subr.bf16.mxu0 0
    %673 = vmatpush1.bf16.msra.mxu0 0
    %674 = vmatprep.subr.bf16.mxu0 0
    %675 = vmatpush1.bf16.msra.mxu0 0
    %676 = vmatprep.subr.bf16.mxu0 0
    %677 = vmatpush1.bf16.msra.mxu0 0
    %678 = vmatprep.subr.bf16.mxu0 0
    %679 = vmatpush1.bf16.msra.mxu0 0
    %680 = vmatprep.subr.bf16.mxu0 0
    %681 = vmatpush1.bf16.msra.mxu0 0
    %682 = vmatprep.subr.bf16.mxu0 0
    %683 = vmatpush1.bf16.msra.mxu0 0
    %684 = vmatprep.subr.bf16.mxu0 0
    %685 = vmatpush1.bf16.msra.mxu0 0
    %686 = vmatprep.subr.bf16.mxu0 0
    %687 = vmatpush1.bf16.msra.mxu0 0
    %688 = vmatprep.subr.bf16.mxu0 0
    %689 = vmatpush1.bf16.msra.mxu0 0
    %690 = vmatprep.mubr.bf16.mxu0 0
    %691 = vmatmul.mubr.bf16.gmra.mrb[0].mxu0 %v653
    %v692 = vpop.f32.mrb[0].mxu0
    %v693 = vadd.f32 0.0, %v692
    %v694 = vpop.f32.mrb[0].mxu0
    %v695 = vpop.f32.mrb[0].mxu0
    %v696 = vadd.f32 0.0, %v695
    %v697 = vpop.f32.mrb[0].mxu0
    %698 = vmatprep.mubr.bf16.mxu0 0
    %699 = vmatmul.mubr.bf16.gmra.mrb[0].mxu0 %v656
    %v700 = vpop.f32.mrb[0].mxu0
    %v701 = vadd.f32 0.0, %v700
    %v702 = vpop.f32.mrb[0].mxu0
    %v703 = vpop.f32.mrb[0].mxu0
    %v704 = vadd.f32 0.0, %v703
    %v705 = vpop.f32.mrb[0].mxu0
    %706 = vdwg.mxu0
    %v715 = vunpack.c.l.b16 %v609
    %v716 = vunpack.c.l.b16 %v610
    %v717 = vunpack.c.l.b16 %v611
    %v718 = vunpack.c.l.b16 %v612
    %v719 = vunpack.c.l.b16 %v613
    %v720 = vunpack.c.l.b16 %v614
    %v721 = vunpack.c.l.b16 %v615
    %v722 = vunpack.c.l.b16 %v616
    %v723 = vpack.c.b16 %v716, %v715
    %v724 = vpack.c.b16 %v718, %v717
    %v725 = vpack.c.b16 %v720, %v719
    %v726 = vpack.c.b16 %v722, %v721
    %v732 = vsel %vm189, %v607, 0
    %v735 = vsel %vm189, %v608, 0
    %737 = vmatprep.subr.bf16.mxu0 0
    %738 = vmatpush1.bf16.msra.mxu0 %v723
    %739 = vmatprep.subr.bf16.mxu0 0
    %740 = vmatpush1.bf16.msra.mxu0 %v724
    %741 = vmatprep.subr.bf16.mxu0 0
    %742 = vmatpush1.bf16.msra.mxu0 %v725
    %743 = vmatprep.subr.bf16.mxu0 0
    %744 = vmatpush1.bf16.msra.mxu0 %v726
    %745 = vmatprep.subr.bf16.mxu0 0
    %746 = vmatpush1.bf16.msra.mxu0 0
    %747 = vmatprep.subr.bf16.mxu0 0
    %748 = vmatpush1.bf16.msra.mxu0 0
    %749 = vmatprep.subr.bf16.mxu0 0
    %750 = vmatpush1.bf16.msra.mxu0 0
    %751 = vmatprep.subr.bf16.mxu0 0
    %752 = vmatpush1.bf16.msra.mxu0 0
    %753 = vmatprep.subr.bf16.mxu0 0
    %754 = vmatpush1.bf16.msra.mxu0 0
    %755 = vmatprep.subr.bf16.mxu0 0
    %756 = vmatpush1.bf16.msra.mxu0 0
    %757 = vmatprep.subr.bf16.mxu0 0
    %758 = vmatpush1.bf16.msra.mxu0 0
    %759 = vmatprep.subr.bf16.mxu0 0
    %760 = vmatpush1.bf16.msra.mxu0 0
    %761 = vmatprep.subr.bf16.mxu0 0
    %762 = vmatpush1.bf16.msra.mxu0 0
    %763 = vmatprep.subr.bf16.mxu0 0
    %764 = vmatpush1.bf16.msra.mxu0 0
    %765 = vmatprep.subr.bf16.mxu0 0
    %766 = vmatpush1.bf16.msra.mxu0 0
    %767 = vmatprep.subr.bf16.mxu0 0
    %768 = vmatpush1.bf16.msra.mxu0 0
    %769 = vmatprep.mubr.bf16.mxu0 0
    %770 = vmatmul.mubr.bf16.gmra.mrb[0].mxu0 %v732
    %v771 = vpop.f32.mrb[0].mxu0
    %v772 = vadd.f32 %v693, %v771
    %v773 = vpop.f32.mrb[0].mxu0
    %v774 = vpop.f32.mrb[0].mxu0
    %v775 = vadd.f32 %v696, %v774
    %v776 = vpop.f32.mrb[0].mxu0
    %777 = vmatprep.mubr.bf16.mxu0 0
    %778 = vmatmul.mubr.bf16.gmra.mrb[0].mxu0 %v735
    %v779 = vpop.f32.mrb[0].mxu0
    %v780 = vadd.f32 %v701, %v779
    %v781 = vpop.f32.mrb[0].mxu0
    %v782 = vpop.f32.mrb[0].mxu0
    %v783 = vadd.f32 %v704, %v782
    %v784 = vpop.f32.mrb[0].mxu0
    %785 = vdwg.mxu0
    %v786 = vrot.slane %v591, 1
    %v787 = vrot.slane %v592, 1
    %v788 = vrot.slane %v593, 1
    %v789 = vrot.slane %v594, 1
    %v790 = vsel %vm461, %v788, %v789
    %v791 = vsel %vm461, %v787, %v788
    %v792 = vsel %vm461, %v786, %v787
    %v793 = vsel %vm461, %v789, %v786
    %v794 = vsel %vm478, %v792, 0.0
    %v795 = vsel %vm479, %v791, 0.0
    %v796 = vsel %vm480, %v790, 0.0
    %v797 = vsel %vm481, %v793, 0.0
    %v798 = vpack.c.bf16 %v795, %v794
    %v799 = vpack.c.bf16 %v797, %v796
    %s800 = scalar_lea.vmem [#allocation8], 64
    %v801 = vld [vmem:[%s800] sm:$0xf]
    %v802 = vld [vmem:[%s800 + $0x4] sm:$0xf]
    %v803 = vld [vmem:[%s800 + $0x8] sm:$0xf]
    %v804 = vld [vmem:[%s800 + $0xc] sm:$0xf]
    %v805 = vld [vmem:[%s800 + $0x10] sm:$0xf]
    %v806 = vld [vmem:[%s800 + $0x14] sm:$0xf]
    %v807 = vld [vmem:[%s800 + $0x18] sm:$0xf]
    %v808 = vld [vmem:[%s800 + $0x1c] sm:$0xf]
    %v817 = vunpack.c.l.b16 %v801
    %v818 = vunpack.c.l.b16 %v802
    %v819 = vunpack.c.l.b16 %v803
    %v820 = vunpack.c.l.b16 %v804
    %v821 = vunpack.c.l.b16 %v805
    %v822 = vunpack.c.l.b16 %v806
    %v823 = vunpack.c.l.b16 %v807
    %v824 = vunpack.c.l.b16 %v808
    %v825 = vpack.c.b16 %v818, %v817
    %v826 = vpack.c.b16 %v820, %v819
    %v827 = vpack.c.b16 %v822, %v821
    %v828 = vpack.c.b16 %v824, %v823
    %v834 = vsel %vm189, %v798, 0
    %v837 = vsel %vm189, %v799, 0
    %839 = vmatprep.subr.bf16.mxu0 0
    %840 = vmatpush1.bf16.msra.mxu0 %v825
    %841 = vmatprep.subr.bf16.mxu0 0
    %842 = vmatpush1.bf16.msra.mxu0 %v826
    %843 = vmatprep.subr.bf16.mxu0 0
    %844 = vmatpush1.bf16.msra.mxu0 %v827
    %845 = vmatprep.subr.bf16.mxu0 0
    %846 = vmatpush1.bf16.msra.mxu0 %v828
    %847 = vmatprep.subr.bf16.mxu0 0
    %848 = vmatpush1.bf16.msra.mxu0 0
    %849 = vmatprep.subr.bf16.mxu0 0
    %850 = vmatpush1.bf16.msra.mxu0 0
    %851 = vmatprep.subr.bf16.mxu0 0
    %852 = vmatpush1.bf16.msra.mxu0 0
    %853 = vmatprep.subr.bf16.mxu0 0
    %854 = vmatpush1.bf16.msra.mxu0 0
    %855 = vmatprep.subr.bf16.mxu0 0
    %856 = vmatpush1.bf16.msra.mxu0 0
    %857 = vmatprep.subr.bf16.mxu0 0
    %858 = vmatpush1.bf16.msra.mxu0 0
    %859 = vmatprep.subr.bf16.mxu0 0
    %860 = vmatpush1.bf16.msra.mxu0 0
    %861 = vmatprep.subr.bf16.mxu0 0
    %862 = vmatpush1.bf16.msra.mxu0 0
    %863 = vmatprep.subr.bf16.mxu0 0
    %864 = vmatpush1.bf16.msra.mxu0 0
    %865 = vmatprep.subr.bf16.mxu0 0
    %866 = vmatpush1.bf16.msra.mxu0 0
    %867 = vmatprep.subr.bf16.mxu0 0
    %868 = vmatpush1.bf16.msra.mxu0 0
    %869 = vmatprep.subr.bf16.mxu0 0
    %870 = vmatpush1.bf16.msra.mxu0 0
    %871 = vmatprep.mubr.bf16.mxu0 0
    %872 = vmatmul.mubr.bf16.gmra.mrb[0].mxu0 %v834
    %v873 = vpop.f32.mrb[0].mxu0
    %v874 = vadd.f32 0.0, %v873
    %v875 = vpop.f32.mrb[0].mxu0
    %v876 = vpop.f32.mrb[0].mxu0
    %v877 = vadd.f32 0.0, %v876
    %v878 = vpop.f32.mrb[0].mxu0
    %879 = vmatprep.mubr.bf16.mxu0 0
    %880 = vmatmul.mubr.bf16.gmra.mrb[0].mxu0 %v837
    %v881 = vpop.f32.mrb[0].mxu0
    %v882 = vadd.f32 0.0, %v881
    %v883 = vpop.f32.mrb[0].mxu0
    %v884 = vpop.f32.mrb[0].mxu0
    %v885 = vadd.f32 0.0, %v884
    %v886 = vpop.f32.mrb[0].mxu0
    %887 = vdwg.mxu0
    %v888 = vadd.f32 %v772, %v874
    %v889 = vadd.f32 %v775, %v877
    %v890 = vadd.f32 %v780, %v882
    %v891 = vadd.f32 %v783, %v885
    %v892 = vld [vmem:[%s6] sm:$0x1]
    %v894 = vlaneseq
    %v895 = vshrl.u32 %v894, 7
    %v896 = vsub.s32 0, %v895
    %v897 = vrot.slane %v892, %v896
    %v899 = vadd.f32 %v888, %v897
    %v900 = vadd.f32 %v889, %v897
    %v901 = vadd.f32 %v890, %v897
    %v902 = vadd.f32 %v891, %v897
    %v903 = vunpack.c.l.bf16 %v136
    %v904 = vunpack.c.l.bf16 %v137
    %v905 = vunpack.c.l.bf16 %v138
    %v906 = vunpack.c.l.bf16 %v139
    %v907 = vadd.f32 %v899, %v903
    %v908 = vadd.f32 %v900, %v904
    %v909 = vadd.f32 %v901, %v905
    %v910 = vadd.f32 %v902, %v906
    %v911 = vmax.f32 %v907, 0.0
    %v912 = vmax.f32 %v908, 0.0
    %v913 = vmax.f32 %v909, 0.0
    %v914 = vmax.f32 %v910, 0.0
    %v915 = vpack.c.bf16 %v912, %v911
    %v916 = vpack.c.bf16 %v914, %v913
    %v919 = vunpack.c.l.b16 %v915
    %v920 = vunpack.c.h.b16 %v915
    %v921 = vunpack.c.l.b16 %v916
    %v922 = vunpack.c.h.b16 %v916
    %v923 = vpack.c.b16 %v919, %v919
    %v924 = vpack.c.b16 %v920, %v920
    %v925 = vpack.c.b16 %v921, %v921
    %v926 = vpack.c.b16 %v922, %v922
    %vm931 = vcmask 519168
    %932 = vst.msk [vmem:[#allocation10] sm:$0xf] %vm931, %v923
    %933 = vst.msk [vmem:[#allocation10 + $0x4] sm:$0xf] %vm931, %v924
    %934 = vst.msk [vmem:[#allocation10 + $0x8] sm:$0xf] %vm931, %v925
    %935 = vst.msk [vmem:[#allocation10 + $0xc] sm:$0xf] %vm931, %v926
    // Predicated region
    $region46: #{tpu_custom_call.1} parent=1 // pred_check
      _
    $region47: #{tpu_custom_call.1} parent=1 // pred_check_branch
      %937 = sbr.rel (0) target = $region49
    $region48: #{tpu_custom_call.1} parent=1 // pred_region
      %s939 = ssub.s32 256, 256
      %940 = vsyncadd [#allocation4], %s939
      %s941 = sshll.u32 [#allocation10], 4
      %s942 = int_to_ptr.vmem [resolvable:$true] %s941
      %947 = dma.vmem_to_hbm [thread:$0]  %s942, 256, %s7, [#allocation4], 64, 64, 4
    $region49: #{tpu_custom_call.1} parent=1 // pred_fallthru
      _
    // Predicated region
    $region50: #{tpu_custom_call.1} parent=1 // pred_check
      _
    $region51: #{tpu_custom_call.1} parent=1 // pred_check_branch
      %949 = sbr.rel (0) target = $region53
    $region52: #{tpu_custom_call.1} parent=1 // pred_region
      %950 = dma.done [#allocation4], 256
    $region53: #{tpu_custom_call.1} parent=1 // pred_fallthru
      _
    %951 = vsyncpa [#allocation3], 1
    %952 = vsyncpa [#allocation6], 1
    %953 = vsyncpa [#allocation9], 1
    %954 = vsyncpa [#allocation4], 1

</llo_original>
